<compile_context>
chip_gen: v7x
topology: tpu7x:2x2x1
jax: 0.10.0
libtpu: 0.0.40
codegen_flags: <defaults>
</compile_context>

<pallas_src>
import jax
import jax.numpy as jnp
from jax.experimental import pallas as pl
from jax.experimental.pallas import tpu as pltpu


def adv_loss_kernel(pred_ref, tgt_ref, rew_ref, out_ref, acc_ref):
    j = pl.program_id(1)  # reduction (row-tile) axis for this slice

    @pl.when(j == 0)
    def _():
        acc_ref[...] = jnp.zeros_like(acc_ref)

    pred = pred_ref[...].astype(jnp.float32)          # (TR, C), upcast in-kernel
    tgt = tgt_ref[...]                                # (TR, 1) i32
    rew = rew_ref[...].astype(jnp.float32)            # (TR, 1) f32

    # masked[i, j] = pred[i, j] * reward[i] if j == target[i] else 0
    col = jax.lax.broadcasted_iota(jnp.int32, pred.shape, dimension=1)
    masked = jnp.where(col == tgt, pred * rew, 0.0)   # (TR, C) f32, single select+mul

    # Collapse groups of 8 rows with pure element-wise (VPU) adds — no per-step
    # cross-lane reduction, no per-step scalar read-modify-write on the output.
    tr, c = masked.shape
    acc_ref[...] += jnp.sum(masked.reshape(tr // 8, 8, c), axis=0)

    # Only the last step does the cross-lane reduce, negate, and (1,1) store.
    @pl.when(j == pl.num_programs(1) - 1)
    def _():
        out_ref[...] = -jnp.sum(acc_ref[...], axis=(0, 1), keepdims=True)


def adversarial_loss(pred, target, reward, *, vmem_budget_bytes=16 * 1024 * 1024):
    """pred: (N, C) float (any dtype), target: (N,) int, reward: (N,) float -> scalar f32."""
    N, C = pred.shape
    assert N % 8 == 0, "N (= batch*seq rows) must be a multiple of 8"

    tgt = target.reshape(N, 1).astype(jnp.int32)
    rew = reward.reshape(N, 1).astype(jnp.float32)
    # NOTE: pred deliberately NOT cast here — it streams in its native dtype (e.g. bf16).

    itemsize = jnp.dtype(pred.dtype).itemsize
    # Per-row VMEM cost of one pipeline buffer: pred row + lane-padded tgt/rew rows.
    bytes_per_row = C * itemsize + 2 * 128 * 4
    # Double-buffered inputs must fit the budget; rows in multiples of 8.
    max_rows = max(8, (vmem_budget_bytes // (2 * bytes_per_row)) // 8 * 8)
    tile_rows = min(max_rows, N)
    while N % tile_rows != 0:
        tile_rows -= 8
    num_tiles = N // tile_rows

    # Split the row-tile reduction across TensorCores when possible (v7x has 2 TCs).
    num_slices = 2 if (num_tiles >= 2 and num_tiles % 2 == 0) else 1
    tiles_per_slice = num_tiles // num_slices
    grid = (num_slices, tiles_per_slice)

    # VMEM limit sized to the actual footprint (with margin), capped at a safe 32 MiB.
    need = (2 * tile_rows * C * itemsize          # double-buffered pred
            + 2 * 2 * tile_rows * 128 * 4         # double-buffered tgt/rew (lane-padded)
            + 8 * C * 4)                          # accumulator scratch
    vmem_limit = int(min(max(2 * need, 16 * 1024 * 1024), 32 * 1024 * 1024))

    partials = pl.pallas_call(
        adv_loss_kernel,
        out_shape=jax.ShapeDtypeStruct((num_slices, 1), jnp.float32),
        grid_spec=pltpu.PrefetchScalarGridSpec(
            num_scalar_prefetch=0,
            grid=grid,
            in_specs=[
                pl.BlockSpec((tile_rows, C), lambda p, j: (p * tiles_per_slice + j, 0)),
                pl.BlockSpec((tile_rows, 1), lambda p, j: (p * tiles_per_slice + j, 0)),
                pl.BlockSpec((tile_rows, 1), lambda p, j: (p * tiles_per_slice + j, 0)),
            ],
            out_specs=pl.BlockSpec((1, 1), lambda p, j: (p, 0)),
            scratch_shapes=[pltpu.VMEM((8, C), jnp.float32)],
        ),
        compiler_params=pltpu.CompilerParams(
            dimension_semantics=("parallel", "arbitrary"),
            vmem_limit_bytes=vmem_limit,
        ),
    )(pred, tgt, rew)

    return jnp.sum(partials)


if __name__ == "__main__":
    # Case 1: small shapes implied by the module (batch=2, seq=4 -> N=8 rows), vocab C=128.
    batch, seq, vocab = 2, 4, 128
    N = batch * seq

    key = jax.random.PRNGKey(0)
    k1, k2, k3 = jax.random.split(key, 3)
    logits = jax.random.normal(k1, (N, vocab), dtype=jnp.float32)
    pred = jax.nn.log_softmax(logits, axis=-1)
    target = jax.random.randint(k2, (N,), 0, vocab, dtype=jnp.int32)
    reward = jax.random.uniform(k3, (N,), dtype=jnp.float32)

    loss = jax.block_until_ready(adversarial_loss(pred, target, reward))
    sel = jnp.take_along_axis(pred, target[:, None], axis=1)[:, 0]
    ref = -jnp.sum(sel * reward)
    assert jnp.allclose(loss, ref, rtol=1e-5, atol=1e-5), (loss, ref)

    # Case 2: exercise the multi-tile + two-slice (per-core partial) path with bf16 pred
    # kept in its native dtype (no wrapper cast).
    N2, vocab2 = 64, 256
    k4, k5, k6 = jax.random.split(jax.random.PRNGKey(1), 3)
    pred2 = jax.nn.log_softmax(
        jax.random.normal(k4, (N2, vocab2), dtype=jnp.float32), axis=-1
    ).astype(jnp.bfloat16)
    target2 = jax.random.randint(k5, (N2,), 0, vocab2, dtype=jnp.int32)
    reward2 = jax.random.uniform(k6, (N2,), dtype=jnp.float32)

    loss2 = jax.block_until_ready(
        adversarial_loss(pred2, target2, reward2, vmem_budget_bytes=50_000)
    )
    sel2 = jnp.take_along_axis(pred2.astype(jnp.float32), target2[:, None], axis=1)[:, 0]
    ref2 = -jnp.sum(sel2 * reward2)
    assert jnp.allclose(loss2, ref2, rtol=1e-4, atol=1e-4), (loss2, ref2)

    print("KERNEL_OK")
</pallas_src>

<mosaic_0001>
module attributes {stable_mosaic.version = 11 : i64} {
  func.func @adv_loss_kernel(%arg0: i32, %arg1: i32, %arg2: memref<8x128xf32, #tpu.memory_space<vmem>>, %arg3: memref<8x1xi32, #tpu.memory_space<vmem>>, %arg4: memref<8x1xf32, #tpu.memory_space<vmem>>, %arg5: memref<1x1xf32, #tpu.memory_space<vmem>>, %arg6: memref<8x128xf32, #tpu.memory_space<vmem>>) attributes {dimension_semantics = [#tpu.dimension_semantics<parallel>, #tpu.dimension_semantics<arbitrary>], iteration_bounds = array<i64: 1, 1>, scalar_prefetch = 0 : i64, scratch_operands = 1 : i64, tpu.core_type = #tpu.core_type<tc>, window_params = [{transform_indices = @transform_0, window_bounds = array<i64: 8, 128>}, {transform_indices = @transform_1, window_bounds = array<i64: 8, 1>}, {transform_indices = @transform_2, window_bounds = array<i64: 8, 1>}, {transform_indices = @transform_3, window_bounds = array<i64: 1, 1>}]} {
    %c0_i32 = arith.constant 0 : i32
    %0 = arith.cmpi eq, %arg1, %c0_i32 : i32
    %1 = arith.extui %0 : i1 to i32
    %c0_i32_0 = arith.constant 0 : i32
    %2 = arith.cmpi ne, %1, %c0_i32_0 : i32
    scf.if %2 {
      %cst_13 = arith.constant 0.000000e+00 : f32
      %21 = vector.broadcast %cst_13 : f32 to vector<8x128xf32>
      %c0_14 = arith.constant 0 : index
      %c0_15 = arith.constant 0 : index
      %22 = vector.load %arg6[%c0_14, %c0_15] : memref<8x128xf32, #tpu.memory_space<vmem>>, vector<8x128xf32>
      tpu.vector_store %arg6[%c0_14, %c0_15], %21 {strides = array<i32>} : memref<8x128xf32, #tpu.memory_space<vmem>>, vector<8x128xf32>,
    } else {
    }
    %c0 = arith.constant 0 : index
    %c0_1 = arith.constant 0 : index
    %3 = vector.load %arg2[%c0, %c0_1] : memref<8x128xf32, #tpu.memory_space<vmem>>, vector<8x128xf32>
    %c0_2 = arith.constant 0 : index
    %c0_3 = arith.constant 0 : index
    %4 = vector.load %arg3[%c0_2, %c0_3] : memref<8x1xi32, #tpu.memory_space<vmem>>, vector<8x1xi32>
    %c0_4 = arith.constant 0 : index
    %c0_5 = arith.constant 0 : index
    %5 = vector.load %arg4[%c0_4, %c0_5] : memref<8x1xf32, #tpu.memory_space<vmem>>, vector<8x1xf32>
    %6 = tpu.iota {dimensions = array<i32: 1>} : vector<8x128xi32>
    %7 = vector.broadcast %4 : vector<8x1xi32> to vector<8x128xi32>
    %8 = arith.cmpi eq, %6, %7 : vector<8x128xi32>
    %9 = vector.broadcast %5 : vector<8x1xf32> to vector<8x128xf32>
    %10 = arith.mulf %3, %9 : vector<8x128xf32>
    %cst = arith.constant 0.000000e+00 : f32
    %11 = vector.broadcast %cst : f32 to vector<8x128xf32>
    %12 = arith.select %8, %10, %11 : vector<8x128xi1>, vector<8x128xf32>
    %c0_6 = arith.constant 0 : index
    %c0_7 = arith.constant 0 : index
    %13 = vector.load %arg6[%c0_6, %c0_7] : memref<8x128xf32, #tpu.memory_space<vmem>>, vector<8x128xf32>
    %14 = vector.shape_cast %12 : vector<8x128xf32> to vector<1x8x128xf32>
    %cst_8 = arith.constant dense<0.000000e+00> : vector<8x128xf32>
    %15 = vector.multi_reduction <add>, %14, %cst_8 [0] : vector<1x8x128xf32> to vector<8x128xf32>
    %16 = arith.addf %13, %15 : vector<8x128xf32>
    %c0_9 = arith.constant 0 : index
    %c0_10 = arith.constant 0 : index
    %17 = vector.load %arg6[%c0_9, %c0_10] : memref<8x128xf32, #tpu.memory_space<vmem>>, vector<8x128xf32>
    tpu.vector_store %arg6[%c0_9, %c0_10], %16 {strides = array<i32>} : memref<8x128xf32, #tpu.memory_space<vmem>>, vector<8x128xf32>,
    %c0_i32_11 = arith.constant 0 : i32
    %18 = arith.cmpi eq, %arg1, %c0_i32_11 : i32
    %19 = arith.extui %18 : i1 to i32
    %c0_i32_12 = arith.constant 0 : i32
    %20 = arith.cmpi ne, %19, %c0_i32_12 : i32
    scf.if %20 {
      %c0_13 = arith.constant 0 : index
      %c0_14 = arith.constant 0 : index
      %21 = vector.load %arg6[%c0_13, %c0_14] : memref<8x128xf32, #tpu.memory_space<vmem>>, vector<8x128xf32>
      %22 = vector.shape_cast %21 : vector<8x128xf32> to vector<1x8x128xf32>
      %cst_15 = arith.constant dense<0.000000e+00> : vector<1xf32>
      %23 = vector.multi_reduction <add>, %22, %cst_15 [1, 2] : vector<1x8x128xf32> to vector<1xf32>
      %24 = vector.shape_cast %23 : vector<1xf32> to vector<1x1x1xf32>
      %25 = vector.extract %24[0, 0, 0] : f32 from vector<1x1x1xf32>
      %26 = vector.broadcast %25 : f32 to vector<1x1xf32>
      %cst_16 = arith.constant 0.000000e+00 : f32
      %27 = vector.broadcast %cst_16 : f32 to vector<1x1xf32>
      %28 = arith.subf %27, %26 : vector<1x1xf32>
      %c0_17 = arith.constant 0 : index
      %c0_18 = arith.constant 0 : index
      %29 = vector.load %arg5[%c0_17, %c0_18] : memref<1x1xf32, #tpu.memory_space<vmem>>, vector<1x1xf32>
      tpu.vector_store %arg5[%c0_17, %c0_18], %28 {strides = array<i32>} : memref<1x1xf32, #tpu.memory_space<vmem>>, vector<1x1xf32>,
    } else {
    }
    return
  }
  func.func @transform_0(%arg0: i32, %arg1: i32) -> (i32, i32) {
    %c1_i32 = arith.constant 1 : i32
    %0 = arith.muli %arg0, %c1_i32 : i32
    %1 = arith.addi %0, %arg1 : i32
    %c0_i32 = arith.constant 0 : i32
    %c0_i32_0 = arith.constant 0 : i32
    return %1, %c0_i32 : i32, i32
  }
  func.func @transform_1(%arg0: i32, %arg1: i32) -> (i32, i32) {
    %c1_i32 = arith.constant 1 : i32
    %0 = arith.muli %arg0, %c1_i32 : i32
    %1 = arith.addi %0, %arg1 : i32
    %c0_i32 = arith.constant 0 : i32
    %c0_i32_0 = arith.constant 0 : i32
    return %1, %c0_i32 : i32, i32
  }
  func.func @transform_2(%arg0: i32, %arg1: i32) -> (i32, i32) {
    %c1_i32 = arith.constant 1 : i32
    %0 = arith.muli %arg0, %c1_i32 : i32
    %1 = arith.addi %0, %arg1 : i32
    %c0_i32 = arith.constant 0 : i32
    %c0_i32_0 = arith.constant 0 : i32
    return %1, %c0_i32 : i32, i32
  }
  func.func @transform_3(%arg0: i32, %arg1: i32) -> (i32, i32) {
    %c0_i32 = arith.constant 0 : i32
    %c0_i32_0 = arith.constant 0 : i32
    return %arg0, %c0_i32 : i32, i32
  }
}

</mosaic_0001>

<llo_original>
// kernel: tpu_custom_call.1
$region0: #{tpu_custom_call.1}
  #allocation0 [shape = 'u32[]', space=smem, size = 0x4, offset = 0x4, fixed_abs, tag = 'smem constant byte address 0x4 - core index']
  #allocation1 [shape = 'u32[144,128]{1,0:T(1,128)}', space=vmem, size = 0x12000, scoped, tag = 'internal scratch']
  #allocation2 [shape = 'f32[8,128]{1,0:T(8,128)}', space=vmem, size = 0x1000, scoped, tag = 'scratch operand']
  %s0 = inlined_call_operand.vmem [shape: f32[8,128], index: 0, kind: input, shape index: {}]
  %s1 = inlined_call_operand.vmem [shape: s32[8,1], index: 1, kind: input, shape index: {}]
  %s2 = inlined_call_operand.vmem [shape: f32[8,1], index: 2, kind: input, shape index: {}]
  %s3 = inlined_call_operand.hbm [shape: f32[1,1], index: 3, kind: output, shape index: {}]
  %s4 = sld [smem:[#allocation0]]
  $region30: #{tpu_custom_call.1} parent=0
    _
  %s6 = ssub.s32 1, %s4
  %s7 = scalar_select 0, %s6, %s4
  $region1: #{tpu_custom_call.1} parent=0
    #allocation3 [shape = 'u8[512]{0}', space=vmem, size = 0x400, scoped, tag = 'output window, operand 0, single buffered']
    #allocation4 [shape = 's32[1]{0}', space=sflag, size = 0x4, scoped, tag = 'scoped memory for tpu_custom_call.1']
    %8 = vsyncpa [#allocation4], 0
    // Predicated region
    $region2: #{tpu_custom_call.1} parent=1 // pred_check
      _
    $region3: #{tpu_custom_call.1} parent=1 // pred_check_branch
      %10 = sbr.rel (0) target = $region5
    $region4: #{tpu_custom_call.1} parent=1 // pred_region
      %s11 = sadd.s32 0, 0
      %p12 = scmp.lt.s32.totalorder %s11, 0
      %s13 = scalar_select %p12, %s11, 0
      %s14 = smul.addr %s13, 8
      %s15 = scalar_lea.vmem %s0, %s14
      %s16 = sadd.s32 0, 0
    $region5: #{tpu_custom_call.1} parent=1 // pred_fallthru
      _
    // Predicated region
    $region6: #{tpu_custom_call.1} parent=1 // pred_check
      _
    $region7: #{tpu_custom_call.1} parent=1 // pred_check_branch
      %18 = sbr.rel (0) target = $region9
    $region8: #{tpu_custom_call.1} parent=1 // pred_region
      %s19 = sadd.s32 0, 0
      %p20 = scmp.lt.s32.totalorder %s19, 0
      %s21 = scalar_select %p20, %s19, 0
      %s22 = smul.addr %s21, 8
      %s23 = scalar_lea.vmem %s1, %s22
      %s24 = sadd.s32 0, 0
    $region9: #{tpu_custom_call.1} parent=1 // pred_fallthru
      _
    // Predicated region
    $region10: #{tpu_custom_call.1} parent=1 // pred_check
      _
    $region11: #{tpu_custom_call.1} parent=1 // pred_check_branch
      %26 = sbr.rel (0) target = $region13
    $region12: #{tpu_custom_call.1} parent=1 // pred_region
      %s27 = sadd.s32 0, 0
      %p28 = scmp.lt.s32.totalorder %s27, 0
      %s29 = scalar_select %p28, %s27, 0
      %s30 = smul.addr %s29, 8
      %s31 = scalar_lea.vmem %s2, %s30
      %s32 = sadd.s32 0, 0
    $region13: #{tpu_custom_call.1} parent=1 // pred_fallthru
      _
    %s33 = sadd.s32 0, 0
    %p34 = scmp.lt.s32.totalorder %s33, 0
    %s35 = scalar_select %p34, %s33, 0
    %s36 = smul.addr %s35, 8
    %s37 = scalar_lea.vmem %s0, %s36
    %s38 = sadd.s32 0, 0
    %p39 = scmp.lt.s32.totalorder %s38, 0
    %s40 = scalar_select %p39, %s38, 0
    %s41 = smul.addr %s40, 8
    %s42 = scalar_lea.vmem %s1, %s41
    %s43 = sadd.s32 0, 0
    %p44 = scmp.lt.s32.totalorder %s43, 0
    %s45 = scalar_select %p44, %s43, 0
    %s46 = smul.addr %s45, 8
    %s47 = scalar_lea.vmem %s2, %s46
    %s48 = sadd.s32 0, 0
    %p49 = scmp.lt.s32.totalorder %s48, 0
    %s50 = scalar_select %p49, %s48, 0
    %s51 = smul.addr %s50, 8
    %s52 = scalar_lea.vmem %s0, %s51
    %s53 = sadd.s32 0, 0
    %s54 = sadd.s32 0, 0
    %p55 = scmp.lt.s32.totalorder %s54, 0
    %s56 = scalar_select %p55, %s54, 0
    %s57 = smul.addr %s56, 8
    %s58 = scalar_lea.vmem %s1, %s57
    %s59 = sadd.s32 0, 0
    %s60 = sadd.s32 0, 0
    %p61 = scmp.lt.s32.totalorder %s60, 0
    %s62 = scalar_select %p61, %s60, 0
    %s63 = smul.addr %s62, 8
    %s64 = scalar_lea.vmem %s2, %s63
    %s65 = sadd.s32 0, 0
    %p66 = scmp.eq.s32.totalorder 0, 0
    // Predicated region
    $region14: #{tpu_custom_call.1} parent=1 // pred_check
      %p67 = pneg %p66
    $region15: #{tpu_custom_call.1} parent=1 // pred_check_branch
      %69 = sbr.rel (%p67) target = $region17
    $region16: #{tpu_custom_call.1} parent=1 // pred_region
      %70 = vst [vmem:[#allocation2] sm:$0xff] 0.0
    $region17: #{tpu_custom_call.1} parent=1 // pred_fallthru
      _
    %v71 = vld [vmem:[%s52] sm:$0xff]
    %v72 = vld [vmem:[%s58] sm:$0xff]
    %v73 = vld [vmem:[%s64] sm:$0xff]
    %v74 = vlaneseq
    %v75 = vand.u32 %v74, 127
    %76 = vset.pattern.permute.xlu0 0
    %77 = vperm.xlu0 %76, %v72
    %v78 = vpop.permute.xlu0 %77
    %vm79 = vcmp.eq.s32.totalorder %v75, %v78
    %81 = vset.pattern.permute.xlu0 0
    %82 = vperm.xlu0 %81, %v73
    %v83 = vpop.permute.xlu0 %82
    %v85 = vmul.f32 %v71, %v83
    %v86 = vsel %vm79, %v85, 0.0
    %v87 = vld [vmem:[#allocation2] sm:$0xff]
    %v88 = vadd.f32 %v86, 0.0
    %v89 = vadd.f32 %v87, %v88
    %90 = vst [vmem:[#allocation2] sm:$0xff] %v89
    // Predicated region
    $region18: #{tpu_custom_call.1} parent=1 // pred_check
      %p91 = pneg %p66
    $region19: #{tpu_custom_call.1} parent=1 // pred_check_branch
      %93 = sbr.rel (%p91) target = $region21
    $region20: #{tpu_custom_call.1} parent=1 // pred_region
      %v94 = vld [vmem:[#allocation2] sm:$0xff]
      %95 = vadd.xlane.f32.xlu0 %v94
      %v96 = vpop.xlane.xlu0 %95
      %v97 = vrot.slane %v96, 4
      %v98 = vadd.f32 %v96, %v97
      %v99 = vrot.slane %v98, 2
      %v100 = vadd.f32 %v98, %v99
      %v101 = vrot.slane %v100, 1
      %v102 = vadd.f32 %v100, %v101
      %s103 = vtos %v102
      %v104 = vstv %s103
      %v105 = vsub.f32 0.0, %v104
      %vm106 = vcmask 0
      %107 = vst.msk [vmem:[#allocation3] sm:$0x1] %vm106, %v105
    $region21: #{tpu_custom_call.1} parent=1 // pred_fallthru
      _
    // Predicated region
    $region22: #{tpu_custom_call.1} parent=1 // pred_check
      _
    $region23: #{tpu_custom_call.1} parent=1 // pred_check_branch
      %109 = sbr.rel (0) target = $region25
    $region24: #{tpu_custom_call.1} parent=1 // pred_region
      %s111 = ssub.s32 16, 16
      %112 = vsyncadd [#allocation4], %s111
      %s114 = sshll.u32 [#allocation3], 4
      %s115 = int_to_ptr.vmem [resolvable:$true] %s114
      %117 = dma.vmem_to_hbm [thread:$0]  %s115, 16, %s3, [#allocation4]
    $region25: #{tpu_custom_call.1} parent=1 // pred_fallthru
      _
    // Predicated region
    $region26: #{tpu_custom_call.1} parent=1 // pred_check
      _
    $region27: #{tpu_custom_call.1} parent=1 // pred_check_branch
      %119 = sbr.rel (0) target = $region29
    $region28: #{tpu_custom_call.1} parent=1 // pred_region
      %120 = dma.done [#allocation4], 16
    $region29: #{tpu_custom_call.1} parent=1 // pred_fallthru
      _
    %121 = vsyncpa [#allocation4], 1

</llo_original>
